<compile_context>
chip_gen: v7x
topology: tpu7x:2x2x1
jax: 0.10.0
libtpu: 0.0.40
codegen_flags: <defaults>
</compile_context>

<pallas_src>
import jax
import jax.numpy as jnp
from jax.experimental import pallas as pl
from jax.experimental.pallas import tpu as pltpu

LANE = 128    # TPU lane width (last-dim tile)
ALIGN = 16    # sublane alignment used for slab packing (works for f32 and bf16)


def _round_up(n, m):
    return (n + m - 1) // m * m


def _offsets(n_state):
    """Static row offsets inside the packed hidden-parameter slab."""
    w1_rows = _round_up(max(n_state, 1), ALIGN)
    b1_off = w1_rows
    w2_off = b1_off + ALIGN
    b2_off = w2_off + LANE
    hidden_rows = b2_off + ALIGN
    return b1_off, w2_off, b2_off, hidden_rows


B3_OFF = LANE              # w3 occupies rows [0, 128) of the output slab
OUT_SLAB_ROWS = LANE + ALIGN


def _make_kernel(n_state):
    b1_off, w2_off, b2_off, _ = _offsets(n_state)

    def kernel(x_ref, hp_ref, op_ref, o_ref):
        dt = hp_ref.dtype  # compute dtype for the MXU inputs (f32 or bf16)
        # Static slices of the packed slabs are views -- no extra DMA.
        w1 = hp_ref[0:n_state, :]                                # (n_state, 128)
        b1 = hp_ref[b1_off:b1_off + 1, :].astype(jnp.float32)    # (1, 128)
        w2 = hp_ref[w2_off:w2_off + LANE, :]                     # (128, 128)
        b2 = hp_ref[b2_off:b2_off + 1, :].astype(jnp.float32)    # (1, 128)
        w3 = op_ref[0:LANE, :]                                   # (128, n_actions)
        b3 = op_ref[B3_OFF:B3_OFF + 1, :].astype(jnp.float32)    # (1, n_actions)

        x = x_ref[...].astype(dt)                                # (tile, n_state)
        # Zero padding is ReLU-stable: padded hidden lanes stay exactly 0.
        h1 = jnp.maximum(
            jnp.dot(x, w1, preferred_element_type=jnp.float32) + b1, 0.0)
        h2 = jnp.maximum(
            jnp.dot(h1.astype(dt), w2, preferred_element_type=jnp.float32) + b2, 0.0)
        out = jnp.dot(h2.astype(dt), w3, preferred_element_type=jnp.float32) + b3
        o_ref[...] = out.astype(o_ref.dtype)                     # (tile, n_actions)

    return kernel


def init_params(key, n_state_input, n_hidden_1, n_hidden_2, n_actions):
    """PyTorch-default Linear init (uniform +/- 1/sqrt(fan_in)); weights are (in, out)."""
    ks = jax.random.split(key, 6)

    def linear(kw, kb, fan_in, fan_out):
        bound = 1.0 / jnp.sqrt(jnp.float32(fan_in))
        w = jax.random.uniform(kw, (fan_in, fan_out), jnp.float32, -bound, bound)
        b = jax.random.uniform(kb, (1, fan_out), jnp.float32, -bound, bound)
        return w, b

    w1, b1 = linear(ks[0], ks[1], n_state_input, n_hidden_1)
    w2, b2 = linear(ks[2], ks[3], n_hidden_1, n_hidden_2)
    w3, b3 = linear(ks[4], ks[5], n_hidden_2, n_actions)
    return dict(w1=w1, b1=b1, w2=w2, b2=b2, w3=w3, b3=b3)


def pack_params(params, dtype=jnp.float32):
    """Pack parameters into two slabs (built once at init, 2 param DMAs per call):

      hidden slab: (hidden_rows, 128)       -- w1 | b1 | w2 | b2, zero lane-padded
      output slab: (144, n_actions)         -- w3 | b3, zero row-padded

    Pass dtype=jnp.bfloat16 to run the MXU in bf16 (f32 accumulation is kept).
    """
    n_state, n_h1 = params["w1"].shape
    _, n_h2 = params["w2"].shape
    _, n_actions = params["w3"].shape
    assert n_h1 <= LANE and n_h2 <= LANE and n_actions <= LANE, \
        "single-tile design requires hidden/action dims <= 128"

    def pad_to(a, rows, cols):
        r, c = a.shape
        assert r <= rows and c <= cols
        return jnp.zeros((rows, cols), dtype).at[:r, :c].set(a.astype(dtype))

    b1_off, w2_off, b2_off, hidden_rows = _offsets(n_state)
    hidden_slab = jnp.concatenate(
        [pad_to(params["w1"], b1_off, LANE),
         pad_to(params["b1"], ALIGN, LANE),
         pad_to(params["w2"], LANE, LANE),
         pad_to(params["b2"], ALIGN, LANE)],
        axis=0)
    assert hidden_slab.shape == (hidden_rows, LANE)

    out_slab = jnp.concatenate(
        [pad_to(params["w3"], LANE, n_actions),
         pad_to(params["b3"], ALIGN, n_actions)],
        axis=0)
    assert out_slab.shape == (OUT_SLAB_ROWS, n_actions)
    return hidden_slab, out_slab


def mlp_dqn_forward(x, packed_params, batch_tile=2048):
    """x: (B, n_state_input) float32. Returns (B, n_actions) float32."""
    hidden_slab, out_slab = packed_params
    B, n_state = x.shape
    n_actions = out_slab.shape[1]
    hp_rows = hidden_slab.shape[0]
    op_rows = out_slab.shape[0]
    kernel = _make_kernel(n_state)

    if B <= batch_tile:
        # Tiny-batch inference path: ONE dispatch, whole arrays VMEM-resident,
        # no wrapper pad or slice ops.
        return pl.pallas_call(
            kernel,
            out_shape=jax.ShapeDtypeStruct((B, n_actions), jnp.float32),
            in_specs=[pl.BlockSpec(memory_space=pltpu.MemorySpace.VMEM)] * 3,
            out_specs=pl.BlockSpec(memory_space=pltpu.MemorySpace.VMEM),
        )(x, hidden_slab, out_slab)

    # Large-batch (training / replay) path: tile B with a double-buffered
    # pipeline; parameter slabs are block-resident (constant index_map).
    B_pad = _round_up(B, batch_tile)
    x_in = x if B_pad == B else jnp.zeros((B_pad, n_state), x.dtype).at[:B].set(x)
    out = pl.pallas_call(
        kernel,
        out_shape=jax.ShapeDtypeStruct((B_pad, n_actions), jnp.float32),
        grid=(B_pad // batch_tile,),
        in_specs=[
            # last dims equal the full array dims, so narrow blocks are legal
            pl.BlockSpec((batch_tile, n_state), lambda i: (i, 0)),
            pl.BlockSpec((hp_rows, LANE), lambda i: (0, 0)),
            pl.BlockSpec((op_rows, n_actions), lambda i: (0, 0)),
        ],
        out_specs=pl.BlockSpec((batch_tile, n_actions), lambda i: (i, 0)),
        compiler_params=pltpu.CompilerParams(
            dimension_semantics=("parallel",)),
    )(x_in, hidden_slab, out_slab)
    return out if B_pad == B else out[:B]


def reference_forward(x, params):
    h1 = jnp.maximum(x @ params["w1"] + params["b1"], 0.0)
    h2 = jnp.maximum(h1 @ params["w2"] + params["b2"], 0.0)
    return h2 @ params["w3"] + params["b3"]


if __name__ == "__main__":
    # Shapes consistent with an MLP DQN: batch=8, state=16, hidden=32/32, actions=4.
    B, n_state, n_h1, n_h2, n_actions = 8, 16, 32, 32, 4

    key = jax.random.PRNGKey(0)
    k_x, k_p, k_x2 = jax.random.split(key, 3)
    x = jax.random.normal(k_x, (B, n_state), jnp.float32)
    params = init_params(k_p, n_state, n_h1, n_h2, n_actions)
    packed = pack_params(params)

    # Tiny-batch (single-dispatch) path.
    out = jax.block_until_ready(mlp_dqn_forward(x, packed))
    ref = reference_forward(x, params)
    assert out.shape == (B, n_actions)
    assert jnp.allclose(out, ref, atol=1e-5, rtol=1e-5)

    # Batch-tiled (gridded, megacore-parallel) path; small tile just to exercise
    # a multi-step grid at test shapes (production default is batch_tile=2048).
    B2 = 512
    x2 = jax.random.normal(k_x2, (B2, n_state), jnp.float32)
    out2 = jax.block_until_ready(mlp_dqn_forward(x2, packed, batch_tile=128))
    ref2 = reference_forward(x2, params)
    assert out2.shape == (B2, n_actions)
    assert jnp.allclose(out2, ref2, atol=1e-5, rtol=1e-5)

    # bf16-MXU path (v5e optimization; f32 accumulation retained).
    packed_bf16 = pack_params(params, dtype=jnp.bfloat16)
    out3 = jax.block_until_ready(mlp_dqn_forward(x2, packed_bf16, batch_tile=128))
    assert jnp.allclose(out3, ref2, atol=5e-2, rtol=5e-2)

    print("KERNEL_OK")
</pallas_src>

<mosaic_0001>
module attributes {stable_mosaic.version = 11 : i64} {
  func.func @kernel(%arg0: memref<8x16xf32, #tpu.memory_space<vmem>>, %arg1: memref<176x128xf32, #tpu.memory_space<vmem>>, %arg2: memref<144x4xf32, #tpu.memory_space<vmem>>, %arg3: memref<8x4xf32, #tpu.memory_space<vmem>>) attributes {dimension_semantics = [], scalar_prefetch = 0 : i64, scratch_operands = 0 : i64, tpu.core_type = #tpu.core_type<tc>} {
    %c0 = arith.constant 0 : index
    %c0_0 = arith.constant 0 : index
    %0 = vector.load %arg1[%c0, %c0_0] : memref<176x128xf32, #tpu.memory_space<vmem>>, vector<16x128xf32>
    %c16 = arith.constant 16 : index
    %c0_1 = arith.constant 0 : index
    %1 = vector.load %arg1[%c16, %c0_1] : memref<176x128xf32, #tpu.memory_space<vmem>>, vector<1x128xf32>
    %c32 = arith.constant 32 : index
    %c0_2 = arith.constant 0 : index
    %2 = vector.load %arg1[%c32, %c0_2] : memref<176x128xf32, #tpu.memory_space<vmem>>, vector<128x128xf32>
    %c160 = arith.constant 160 : index
    %c0_3 = arith.constant 0 : index
    %3 = vector.load %arg1[%c160, %c0_3] : memref<176x128xf32, #tpu.memory_space<vmem>>, vector<1x128xf32>
    %c0_4 = arith.constant 0 : index
    %c0_5 = arith.constant 0 : index
    %4 = vector.load %arg2[%c0_4, %c0_5] : memref<144x4xf32, #tpu.memory_space<vmem>>, vector<128x4xf32>
    %c128 = arith.constant 128 : index
    %c0_6 = arith.constant 0 : index
    %5 = vector.load %arg2[%c128, %c0_6] : memref<144x4xf32, #tpu.memory_space<vmem>>, vector<1x4xf32>
    %c0_7 = arith.constant 0 : index
    %c0_8 = arith.constant 0 : index
    %6 = vector.load %arg0[%c0_7, %c0_8] : memref<8x16xf32, #tpu.memory_space<vmem>>, vector<8x16xf32>
    %cst = arith.constant dense<0.000000e+00> : vector<8x128xf32>
    %7 = tpu.matmul %6, %0, %cst {dimension_numbers = #tpu.dot_dimension_numbers<[1], [0], [0], [1], [0, 0, 1, 1], [], []>} : vector<8x16xf32>, vector<16x128xf32>, vector<8x128xf32> -> vector<8x128xf32>
    %8 = vector.broadcast %1 : vector<1x128xf32> to vector<8x128xf32>
    %9 = arith.addf %7, %8 : vector<8x128xf32>
    %cst_9 = arith.constant 0.000000e+00 : f32
    %10 = vector.broadcast %cst_9 : f32 to vector<8x128xf32>
    %11 = arith.maximumf %9, %10 : vector<8x128xf32>
    %cst_10 = arith.constant dense<0.000000e+00> : vector<8x128xf32>
    %12 = tpu.matmul %11, %2, %cst_10 {dimension_numbers = #tpu.dot_dimension_numbers<[1], [0], [0], [1], [0, 0, 1, 1], [], []>} : vector<8x128xf32>, vector<128x128xf32>, vector<8x128xf32> -> vector<8x128xf32>
    %13 = vector.broadcast %3 : vector<1x128xf32> to vector<8x128xf32>
    %14 = arith.addf %12, %13 : vector<8x128xf32>
    %cst_11 = arith.constant 0.000000e+00 : f32
    %15 = vector.broadcast %cst_11 : f32 to vector<8x128xf32>
    %16 = arith.maximumf %14, %15 : vector<8x128xf32>
    %cst_12 = arith.constant dense<0.000000e+00> : vector<8x4xf32>
    %17 = tpu.matmul %16, %4, %cst_12 {dimension_numbers = #tpu.dot_dimension_numbers<[1], [0], [0], [1], [0, 0, 1, 1], [], []>} : vector<8x128xf32>, vector<128x4xf32>, vector<8x4xf32> -> vector<8x4xf32>
    %18 = vector.broadcast %5 : vector<1x4xf32> to vector<8x4xf32>
    %19 = arith.addf %17, %18 : vector<8x4xf32>
    %c0_13 = arith.constant 0 : index
    %c0_14 = arith.constant 0 : index
    %20 = vector.load %arg3[%c0_13, %c0_14] : memref<8x4xf32, #tpu.memory_space<vmem>>, vector<8x4xf32>
    tpu.vector_store %arg3[%c0_13, %c0_14], %19 {strides = array<i32>} : memref<8x4xf32, #tpu.memory_space<vmem>>, vector<8x4xf32>,
    return
  }
}

</mosaic_0001>

<llo_original>
// kernel: tpu_custom_call.1
$region0: #{tpu_custom_call.1}
  #allocation0 [shape = 'u32[]', space=smem, size = 0x4, offset = 0x4, fixed_abs, tag = 'smem constant byte address 0x4 - core index']
  #allocation1 [shape = 'u32[144,128]{1,0:T(1,128)}', space=vmem, size = 0x12000, scoped, tag = 'internal scratch']
  %s0 = inlined_call_operand.vmem [shape: f32[8,16], index: 0, kind: input, shape index: {}]
  %s1 = inlined_call_operand.hbm [shape: f32[176,128], index: 1, kind: input, shape index: {}]
  %s2 = inlined_call_operand.vmem [shape: f32[144,4], index: 2, kind: input, shape index: {}]
  %s3 = inlined_call_operand.vmem [shape: f32[8,4], index: 3, kind: output, shape index: {}]
  %s4 = sld [smem:[#allocation0]]
  $region26: #{tpu_custom_call.1} parent=0
    _
  %s6 = ssub.s32 1, %s4
  %s7 = scalar_select 0, %s6, %s4
  $region1: #{tpu_custom_call.1} parent=0
    #allocation2 [shape = 'u8[90112]{0}', space=vmem, size = 0x16000, scoped, tag = 'input window, operand 1, single buffered']
    #allocation3 [shape = 's32[1]{0}', space=sflag, size = 0x4, scoped, tag = 'scoped memory for tpu_custom_call.1']
    %8 = vsyncpa [#allocation3], 0
    // Predicated region
    $region2: #{tpu_custom_call.1} parent=1 // pred_check
      _
    $region3: #{tpu_custom_call.1} parent=1 // pred_check_branch
      %10 = sbr.rel (0) target = $region5
    $region4: #{tpu_custom_call.1} parent=1 // pred_region
      _
    $region5: #{tpu_custom_call.1} parent=1 // pred_fallthru
      _
    // Predicated region
    $region6: #{tpu_custom_call.1} parent=1 // pred_check
      _
    $region7: #{tpu_custom_call.1} parent=1 // pred_check_branch
      %12 = sbr.rel (0) target = $region9
    $region8: #{tpu_custom_call.1} parent=1 // pred_region
      %s14 = ssub.s32 2816, 2816
      %15 = vsyncadd [#allocation3], %s14
      %s16 = sshll.u32 [#allocation2], 4
      %s17 = int_to_ptr.vmem [resolvable:$true] %s16
      %22 = dma.hbm_to_vmem [thread:$0]  %s1, 2816, %s17, [#allocation3], 128, 128, 8
    $region9: #{tpu_custom_call.1} parent=1 // pred_fallthru
      _
    // Predicated region
    $region10: #{tpu_custom_call.1} parent=1 // pred_check
      _
    $region11: #{tpu_custom_call.1} parent=1 // pred_check_branch
      %24 = sbr.rel (0) target = $region13
    $region12: #{tpu_custom_call.1} parent=1 // pred_region
      _
    $region13: #{tpu_custom_call.1} parent=1 // pred_fallthru
      _
    // Predicated region
    $region14: #{tpu_custom_call.1} parent=1 // pred_check
      _
    $region15: #{tpu_custom_call.1} parent=1 // pred_check_branch
      %26 = sbr.rel (0) target = $region17
    $region16: #{tpu_custom_call.1} parent=1 // pred_region
      %27 = dma.done [#allocation3], 2816
    $region17: #{tpu_custom_call.1} parent=1 // pred_fallthru
      _
    %v28 = vld [vmem:[#allocation2] sm:$0xff]
    %v29 = vld [vmem:[#allocation2 + $0x8] sm:$0xff]
    %v30 = vld [vmem:[#allocation2 + $0x10] sm:$0x1]
    %v31 = vld [vmem:[#allocation2 + $0x20] sm:$0xff]
    %v32 = vld [vmem:[#allocation2 + $0x28] sm:$0xff]
    %v33 = vld [vmem:[#allocation2 + $0x30] sm:$0xff]
    %v34 = vld [vmem:[#allocation2 + $0x38] sm:$0xff]
    %v35 = vld [vmem:[#allocation2 + $0x40] sm:$0xff]
    %v36 = vld [vmem:[#allocation2 + $0x48] sm:$0xff]
    %v37 = vld [vmem:[#allocation2 + $0x50] sm:$0xff]
    %v38 = vld [vmem:[#allocation2 + $0x58] sm:$0xff]
    %v39 = vld [vmem:[#allocation2 + $0x60] sm:$0xff]
    %v40 = vld [vmem:[#allocation2 + $0x68] sm:$0xff]
    %v41 = vld [vmem:[#allocation2 + $0x70] sm:$0xff]
    %v42 = vld [vmem:[#allocation2 + $0x78] sm:$0xff]
    %v43 = vld [vmem:[#allocation2 + $0x80] sm:$0xff]
    %v44 = vld [vmem:[#allocation2 + $0x88] sm:$0xff]
    %v45 = vld [vmem:[#allocation2 + $0x90] sm:$0xff]
    %v46 = vld [vmem:[#allocation2 + $0x98] sm:$0xff]
    %v47 = vld [vmem:[#allocation2 + $0xa0] sm:$0x1]
    %v48 = vld [vmem:[%s2] sm:$0xff]
    %v49 = vld [vmem:[%s2 + $0x8] sm:$0xff]
    %v50 = vld [vmem:[%s2 + $0x10] sm:$0xff]
    %v51 = vld [vmem:[%s2 + $0x18] sm:$0xff]
    %v52 = vld [vmem:[%s2 + $0x20] sm:$0xff]
    %v53 = vld [vmem:[%s2 + $0x28] sm:$0xff]
    %v54 = vld [vmem:[%s2 + $0x30] sm:$0xff]
    %v55 = vld [vmem:[%s2 + $0x38] sm:$0xff]
    %v56 = vld [vmem:[%s2 + $0x40] sm:$0xff]
    %v57 = vld [vmem:[%s2 + $0x48] sm:$0xff]
    %v58 = vld [vmem:[%s2 + $0x50] sm:$0xff]
    %v59 = vld [vmem:[%s2 + $0x58] sm:$0xff]
    %v60 = vld [vmem:[%s2 + $0x60] sm:$0xff]
    %v61 = vld [vmem:[%s2 + $0x68] sm:$0xff]
    %v62 = vld [vmem:[%s2 + $0x70] sm:$0xff]
    %v63 = vld [vmem:[%s2 + $0x78] sm:$0xff]
    %v64 = vld [vmem:[%s2 + $0x80] sm:$0x1]
    %v65 = vld [vmem:[%s0] sm:$0xff]
    %v66 = vlaneseq
    %v67 = vshrl.u32 %v66, 7
    %v68 = vsub.s32 0, %v67
    %v69 = vrot.slane %v30, %v68
    %vm70 = vcmask 130048
    %v72 = vsel %vm70, %v65, 0
    %74 = vmatprep.subr.mxu0 0.0
    %75 = vmatpush1.msra.mxu0 %v28
    %76 = vmatprep.subr.mxu0 0.0
    %77 = vmatpush1.msra.mxu0 %v29
    %78 = vmatprep.subr.mxu0 0.0
    %79 = vmatpush1.msra.mxu0 0.0
    %80 = vmatprep.subr.mxu0 0.0
    %81 = vmatpush1.msra.mxu0 0.0
    %82 = vmatprep.subr.mxu0 0.0
    %83 = vmatpush1.msra.mxu0 0.0
    %84 = vmatprep.subr.mxu0 0.0
    %85 = vmatpush1.msra.mxu0 0.0
    %86 = vmatprep.subr.mxu0 0.0
    %87 = vmatpush1.msra.mxu0 0.0
    %88 = vmatprep.subr.mxu0 0.0
    %89 = vmatpush1.msra.mxu0 0.0
    %90 = vmatprep.subr.mxu0 0.0
    %91 = vmatpush1.msra.mxu0 0.0
    %92 = vmatprep.subr.mxu0 0.0
    %93 = vmatpush1.msra.mxu0 0.0
    %94 = vmatprep.subr.mxu0 0.0
    %95 = vmatpush1.msra.mxu0 0.0
    %96 = vmatprep.subr.mxu0 0.0
    %97 = vmatpush1.msra.mxu0 0.0
    %98 = vmatprep.subr.mxu0 0.0
    %99 = vmatpush1.msra.mxu0 0.0
    %100 = vmatprep.subr.mxu0 0.0
    %101 = vmatpush1.msra.mxu0 0.0
    %102 = vmatprep.subr.mxu0 0.0
    %103 = vmatpush1.msra.mxu0 0.0
    %104 = vmatprep.subr.mxu0 0.0
    %105 = vmatpush1.msra.mxu0 0.0
    %106 = vmatprep.subr.mxu0 0.0
    %107 = vmatpush1.msra.mxu0 0.0
    %108 = vmatprep.subr.mxu0 0.0
    %109 = vmatpush1.msra.mxu0 0.0
    %110 = vmatprep.subr.mxu0 0.0
    %111 = vmatpush1.msra.mxu0 0.0
    %112 = vmatprep.subr.mxu0 0.0
    %113 = vmatpush1.msra.mxu0 0.0
    %114 = vmatprep.subr.mxu0 0.0
    %115 = vmatpush1.msra.mxu0 0.0
    %116 = vmatprep.subr.mxu0 0.0
    %117 = vmatpush1.msra.mxu0 0.0
    %118 = vmatprep.subr.mxu0 0.0
    %119 = vmatpush1.msra.mxu0 0.0
    %120 = vmatprep.subr.mxu0 0.0
    %121 = vmatpush1.msra.mxu0 0.0
    %122 = vmatprep.subr.mxu0 0.0
    %123 = vmatpush1.msra.mxu0 0.0
    %124 = vmatprep.subr.mxu0 0.0
    %125 = vmatpush1.msra.mxu0 0.0
    %126 = vmatprep.subr.mxu0 0.0
    %127 = vmatpush1.msra.mxu0 0.0
    %128 = vmatprep.subr.mxu0 0.0
    %129 = vmatpush1.msra.mxu0 0.0
    %130 = vmatprep.subr.mxu0 0.0
    %131 = vmatpush1.msra.mxu0 0.0
    %132 = vmatprep.subr.mxu0 0.0
    %133 = vmatpush1.msra.mxu0 0.0
    %134 = vmatprep.subr.mxu0 0.0
    %135 = vmatpush1.msra.mxu0 0.0
    %136 = vmatprep.subr.mxu0 0.0
    %137 = vmatpush1.msra.mxu0 0.0
    %138 = vmatprep.mubr.f32.mxu0 0.0
    %139 = vmatmul.mubr.f32.gmra.mrb[0].mxu0 %v72
    %v140 = vpop.f32.mrb[0].mxu0
    %v141 = vadd.f32 %v69, %v140
    %v142 = vpop.f32.mrb[0].mxu0
    %143 = vdwg.mxu0
    %v144 = vmax.f32 %v141, 0.0
    %v145 = vlaneseq
    %v146 = vshrl.u32 %v145, 7
    %v147 = vsub.s32 0, %v146
    %v148 = vrot.slane %v47, %v147
    %149 = vmatprep.subr.mxu0 0.0
    %150 = vmatpush1.msra.mxu0 %v31
    %151 = vmatprep.subr.mxu0 0.0
    %152 = vmatpush1.msra.mxu0 %v32
    %153 = vmatprep.subr.mxu0 0.0
    %154 = vmatpush1.msra.mxu0 %v33
    %155 = vmatprep.subr.mxu0 0.0
    %156 = vmatpush1.msra.mxu0 %v34
    %157 = vmatprep.subr.mxu0 0.0
    %158 = vmatpush1.msra.mxu0 %v35
    %159 = vmatprep.subr.mxu0 0.0
    %160 = vmatpush1.msra.mxu0 %v36
    %161 = vmatprep.subr.mxu0 0.0
    %162 = vmatpush1.msra.mxu0 %v37
    %163 = vmatprep.subr.mxu0 0.0
    %164 = vmatpush1.msra.mxu0 %v38
    %165 = vmatprep.subr.mxu0 0.0
    %166 = vmatpush1.msra.mxu0 %v39
    %167 = vmatprep.subr.mxu0 0.0
    %168 = vmatpush1.msra.mxu0 %v40
    %169 = vmatprep.subr.mxu0 0.0
    %170 = vmatpush1.msra.mxu0 %v41
    %171 = vmatprep.subr.mxu0 0.0
    %172 = vmatpush1.msra.mxu0 %v42
    %173 = vmatprep.subr.mxu0 0.0
    %174 = vmatpush1.msra.mxu0 %v43
    %175 = vmatprep.subr.mxu0 0.0
    %176 = vmatpush1.msra.mxu0 %v44
    %177 = vmatprep.subr.mxu0 0.0
    %178 = vmatpush1.msra.mxu0 %v45
    %179 = vmatprep.subr.mxu0 0.0
    %180 = vmatpush1.msra.mxu0 %v46
    %181 = vmatprep.subr.mxu0 0.0
    %182 = vmatpush1.msra.mxu0 0.0
    %183 = vmatprep.subr.mxu0 0.0
    %184 = vmatpush1.msra.mxu0 0.0
    %185 = vmatprep.subr.mxu0 0.0
    %186 = vmatpush1.msra.mxu0 0.0
    %187 = vmatprep.subr.mxu0 0.0
    %188 = vmatpush1.msra.mxu0 0.0
    %189 = vmatprep.subr.mxu0 0.0
    %190 = vmatpush1.msra.mxu0 0.0
    %191 = vmatprep.subr.mxu0 0.0
    %192 = vmatpush1.msra.mxu0 0.0
    %193 = vmatprep.subr.mxu0 0.0
    %194 = vmatpush1.msra.mxu0 0.0
    %195 = vmatprep.subr.mxu0 0.0
    %196 = vmatpush1.msra.mxu0 0.0
    %197 = vmatprep.subr.mxu0 0.0
    %198 = vmatpush1.msra.mxu0 0.0
    %199 = vmatprep.subr.mxu0 0.0
    %200 = vmatpush1.msra.mxu0 0.0
    %201 = vmatprep.subr.mxu0 0.0
    %202 = vmatpush1.msra.mxu0 0.0
    %203 = vmatprep.subr.mxu0 0.0
    %204 = vmatpush1.msra.mxu0 0.0
    %205 = vmatprep.subr.mxu0 0.0
    %206 = vmatpush1.msra.mxu0 0.0
    %207 = vmatprep.subr.mxu0 0.0
    %208 = vmatpush1.msra.mxu0 0.0
    %209 = vmatprep.subr.mxu0 0.0
    %210 = vmatpush1.msra.mxu0 0.0
    %211 = vmatprep.subr.mxu0 0.0
    %212 = vmatpush1.msra.mxu0 0.0
    %213 = vmatprep.mubr.f32.mxu0 0.0
    %214 = vmatmul.mubr.f32.gmra.mrb[0].mxu0 %v144
    %v215 = vpop.f32.mrb[0].mxu0
    %v216 = vadd.f32 %v148, %v215
    %v217 = vpop.f32.mrb[0].mxu0
    %218 = vdwg.mxu0
    %v219 = vmax.f32 %v216, 0.0
    %v220 = vlaneseq
    %v221 = vshrl.u32 %v220, 7
    %v222 = vsub.s32 0, %v221
    %v223 = vrot.slane %v64, %v222
    %224 = vmatprep.subr.mxu0 0.0
    %225 = vmatpush1.msra.mxu0 %v48
    %226 = vmatprep.subr.mxu0 0.0
    %227 = vmatpush1.msra.mxu0 %v49
    %228 = vmatprep.subr.mxu0 0.0
    %229 = vmatpush1.msra.mxu0 %v50
    %230 = vmatprep.subr.mxu0 0.0
    %231 = vmatpush1.msra.mxu0 %v51
    %232 = vmatprep.subr.mxu0 0.0
    %233 = vmatpush1.msra.mxu0 %v52
    %234 = vmatprep.subr.mxu0 0.0
    %235 = vmatpush1.msra.mxu0 %v53
    %236 = vmatprep.subr.mxu0 0.0
    %237 = vmatpush1.msra.mxu0 %v54
    %238 = vmatprep.subr.mxu0 0.0
    %239 = vmatpush1.msra.mxu0 %v55
    %240 = vmatprep.subr.mxu0 0.0
    %241 = vmatpush1.msra.mxu0 %v56
    %242 = vmatprep.subr.mxu0 0.0
    %243 = vmatpush1.msra.mxu0 %v57
    %244 = vmatprep.subr.mxu0 0.0
    %245 = vmatpush1.msra.mxu0 %v58
    %246 = vmatprep.subr.mxu0 0.0
    %247 = vmatpush1.msra.mxu0 %v59
    %248 = vmatprep.subr.mxu0 0.0
    %249 = vmatpush1.msra.mxu0 %v60
    %250 = vmatprep.subr.mxu0 0.0
    %251 = vmatpush1.msra.mxu0 %v61
    %252 = vmatprep.subr.mxu0 0.0
    %253 = vmatpush1.msra.mxu0 %v62
    %254 = vmatprep.subr.mxu0 0.0
    %255 = vmatpush1.msra.mxu0 %v63
    %256 = vmatprep.subr.mxu0 0.0
    %257 = vmatpush1.msra.mxu0 0.0
    %258 = vmatprep.subr.mxu0 0.0
    %259 = vmatpush1.msra.mxu0 0.0
    %260 = vmatprep.subr.mxu0 0.0
    %261 = vmatpush1.msra.mxu0 0.0
    %262 = vmatprep.subr.mxu0 0.0
    %263 = vmatpush1.msra.mxu0 0.0
    %264 = vmatprep.subr.mxu0 0.0
    %265 = vmatpush1.msra.mxu0 0.0
    %266 = vmatprep.subr.mxu0 0.0
    %267 = vmatpush1.msra.mxu0 0.0
    %268 = vmatprep.subr.mxu0 0.0
    %269 = vmatpush1.msra.mxu0 0.0
    %270 = vmatprep.subr.mxu0 0.0
    %271 = vmatpush1.msra.mxu0 0.0
    %272 = vmatprep.subr.mxu0 0.0
    %273 = vmatpush1.msra.mxu0 0.0
    %274 = vmatprep.subr.mxu0 0.0
    %275 = vmatpush1.msra.mxu0 0.0
    %276 = vmatprep.subr.mxu0 0.0
    %277 = vmatpush1.msra.mxu0 0.0
    %278 = vmatprep.subr.mxu0 0.0
    %279 = vmatpush1.msra.mxu0 0.0
    %280 = vmatprep.subr.mxu0 0.0
    %281 = vmatpush1.msra.mxu0 0.0
    %282 = vmatprep.subr.mxu0 0.0
    %283 = vmatpush1.msra.mxu0 0.0
    %284 = vmatprep.subr.mxu0 0.0
    %285 = vmatpush1.msra.mxu0 0.0
    %286 = vmatprep.subr.mxu0 0.0
    %287 = vmatpush1.msra.mxu0 0.0
    %288 = vmatprep.mubr.f32.mxu0 0.0
    %289 = vmatmul.mubr.f32.gmra.mrb[0].mxu0 %v219
    %v290 = vpop.f32.mrb[0].mxu0
    %v291 = vadd.f32 %v223, %v290
    %v292 = vpop.f32.mrb[0].mxu0
    %293 = vdwg.mxu0
    %vm294 = vcmask 31744
    %295 = vst.msk [vmem:[%s3] sm:$0xff] %vm294, %v291
    // Predicated region
    $region18: #{tpu_custom_call.1} parent=1 // pred_check
      _
    $region19: #{tpu_custom_call.1} parent=1 // pred_check_branch
      %297 = sbr.rel (0) target = $region21
    $region20: #{tpu_custom_call.1} parent=1 // pred_region
      _
    $region21: #{tpu_custom_call.1} parent=1 // pred_fallthru
      _
    // Predicated region
    $region22: #{tpu_custom_call.1} parent=1 // pred_check
      _
    $region23: #{tpu_custom_call.1} parent=1 // pred_check_branch
      %299 = sbr.rel (0) target = $region25
    $region24: #{tpu_custom_call.1} parent=1 // pred_region
      _
    $region25: #{tpu_custom_call.1} parent=1 // pred_fallthru
      _
    %300 = vsyncpa [#allocation3], 1

</llo_original>
